<compile_context>
chip_gen: v6e
topology: v6e:2x2x1
jax: 0.10.0
libtpu: 0.0.40
codegen_flags: <defaults>
</compile_context>

<pallas_src>
import math

import jax
import jax.numpy as jnp
from jax.experimental import pallas as pl
from jax.experimental.pallas import tpu as pltpu


_LANE = 128
_SUBLANE = 8


def _round_up(x: int, m: int) -> int:
    return ((x + m - 1) // m) * m


def _build_kernel(n_rows: int, n_branches: int, g_w: float, j_w: float,
                  inv_b: float, needs_pad_mask: bool):
    """Weighted softmax cross-entropy partial reduction over one row tile.

    scores_ref : (T, C) logits (native dtype; upcast happens after s - m)
    tgt_ref    : (T, 1) int32 per-row class id
    out_ref    : (1, 8, 128) f32 per-tile partial sum (lane-dense store)
    """

    def kernel(scores_ref, tgt_ref, out_ref):
        i = pl.program_id(0)
        s = scores_ref[...]                                    # (T, C) native dtype
        t, c = s.shape
        tgt = tgt_ref[...]                                     # (T, 1) int32

        # Row max / shift in native dtype (exact max, cheap packed bf16 ops on
        # v6e/v7x), single upcast of the shifted values before exp.
        m = jnp.max(s, axis=-1, keepdims=True)                 # (T, 1)
        z = (s - m).astype(jnp.float32)                        # (T, C) f32, <= 0

        # log-sum-exp minus the max, in f32.
        lse_m = jnp.log(jnp.sum(jnp.exp(z), axis=-1, keepdims=True))  # (T, 1)

        # Target logit (minus the max) via a (1, C) lane iota broadcast against
        # the (T, 1) target column -- no (T, C) int32 materialization.
        lane = jax.lax.broadcasted_iota(jnp.int32, (1, c), 1)
        z_tgt = jnp.sum(jnp.where(lane == tgt, z, 0.0),
                        axis=-1, keepdims=True)                # (T, 1)

        ce = lse_m - z_tgt                                     # per-row CE, f32

        # Branch weights computed in-kernel (no captured array constants):
        #   global branch (row % P == 0) -> g_w / B, jigsaw branches -> j_w / B.
        row = jax.lax.broadcasted_iota(jnp.int32, (t, 1), 0) + i * t
        w = jnp.where((row % n_branches) == 0, g_w, j_w) * inv_b
        if needs_pad_mask:
            w = jnp.where(row < n_rows, w, 0.0)                # zero padded rows

        partial = jnp.sum(ce * w)                              # scalar f32
        # lane/sublane-dense, unmasked store of the per-tile partial sum
        out_ref[...] = jnp.broadcast_to(partial, out_ref.shape).astype(jnp.float32)

    return kernel


def softmax_triplet_loss(scores, features, targets, *,
                         jigsaw: bool = True, jigsaw_w: float = 0.5,
                         tile_bytes: int = 6 * 1024 * 1024):
    """JAX/Pallas equivalent of SoftmaxTripletLoss().forward with triplet_fn=None."""
    del features  # TODO(synk): triplet branch (BatchEasyHardMiner + triplet_fn)
    # is never executed by the reference forward when triplet_fn is None (the
    # default), so it is intentionally not implemented here.

    targets = jnp.reshape(targets, (-1,)).astype(jnp.int32)    # robust to B=1
    want_ndim = 3 if jigsaw else 2
    # mirror torch.squeeze for extra singleton dims, but never collapse below
    # the expected rank (keeps degenerate B=1 / P=1 layouts intact).
    while scores.ndim > want_ndim and 1 in scores.shape:
        scores = jnp.squeeze(scores, axis=scores.shape.index(1))
    if not jigsaw:
        scores = scores[:, None, :]
    B, P, C = scores.shape

    if jigsaw and P < 2:
        raise ValueError("jigsaw=True requires at least one jigsaw branch (P >= 2)")

    g_w = (1.0 - jigsaw_w) if jigsaw else 1.0
    j_w = (jigsaw_w / (P - 1)) if jigsaw else 1.0
    inv_b = 1.0 / B

    N = B * P
    scores_rows = scores.reshape(N, C)                   # native dtype, lane-dense
    row_targets = jnp.repeat(targets, P).reshape(N, 1)   # int32, 4 B / row useful

    # --- tile sizing (byte budget with real VMEM accounting) ---------------
    # VMEM lane-pads the class dim to a multiple of 128 and the (T, 1) int32
    # target column to 128 lanes; both are double-buffered by the pipeline.
    itemsize = jnp.dtype(scores_rows.dtype).itemsize
    c_pad = _round_up(C, _LANE)
    bytes_per_row = c_pad * itemsize + _LANE * 4          # scores + target column
    align = math.lcm(4 * _SUBLANE, P)                     # sublane packing + branch pattern

    rows_cap = max(align, (tile_bytes // bytes_per_row) // align * align)
    tr = min(rows_cap, _round_up(N, align))
    if N > align:
        # prefer >= 2 tiles so the "parallel" grid axis feeds both v7x TCs
        tr = min(tr, _round_up(-(-N // 2), align))
    tr = max(tr, align)

    num_tiles = -(-N // tr)
    n_pad = num_tiles * tr
    if n_pad != N:
        scores_rows = jnp.pad(scores_rows, ((0, n_pad - N), (0, 0)))
        row_targets = jnp.pad(row_targets, ((0, n_pad - N), (0, 0)))
    needs_pad_mask = (n_pad != N)

    # actual double-buffered VMEM footprint + headroom, capped for v7x (64 MiB)
    scores_tile_bytes = tr * c_pad * itemsize
    tgt_tile_bytes = tr * _LANE * 4
    out_tile_bytes = _SUBLANE * _LANE * 4
    footprint = 2 * (scores_tile_bytes + tgt_tile_bytes + out_tile_bytes)
    vmem_limit = int(min(max(footprint + (4 << 20), 16 << 20), 48 << 20))

    kernel = _build_kernel(N, P, g_w, j_w, inv_b, needs_pad_mask)

    # TODO(synk): for very large C (tens of thousands of classes) add a class-
    # axis grid dimension with an online running-max / running-exp-sum
    # accumulator instead of requiring the whole (tr, C) row in one tile.
    partials = pl.pallas_call(
        kernel,
        out_shape=jax.ShapeDtypeStruct((num_tiles, _SUBLANE, _LANE), jnp.float32),
        grid=(num_tiles,),
        in_specs=[
            pl.BlockSpec((tr, C), lambda i: (i, 0)),   # logits tile (native dtype)
            pl.BlockSpec((tr, 1), lambda i: (i, 0)),   # per-row int32 targets
        ],
        out_specs=pl.BlockSpec((1, _SUBLANE, _LANE), lambda i: (i, 0, 0)),
        compiler_params=pltpu.CompilerParams(
            dimension_semantics=("parallel",),
            vmem_limit_bytes=vmem_limit),
    )(scores_rows, row_targets)

    # tiny final reduction over per-tile partial sums (one entry per tile)
    return jnp.sum(partials[:, 0, 0])


def _reference_loss(scores, targets, jigsaw_w=0.5):
    """Pure-JAX reference mirroring the PyTorch module (triplet_fn=None, jigsaw=True)."""
    scores = scores.astype(jnp.float32)

    def ce(logits, t):
        lse = jax.nn.logsumexp(logits, axis=-1)
        tgt = jnp.take_along_axis(logits, t[:, None], axis=1)[:, 0]
        return jnp.mean(lse - tgt)

    g = ce(scores[:, 0, :], targets)
    j = jnp.mean(jnp.stack([ce(scores[:, i, :], targets)
                            for i in range(1, scores.shape[1])]))
    return (1.0 - jigsaw_w) * g + jigsaw_w * j


def _reference_loss_nojigsaw(scores, targets):
    scores = scores.astype(jnp.float32)
    lse = jax.nn.logsumexp(scores, axis=-1)
    tgt = jnp.take_along_axis(scores, targets[:, None], axis=1)[:, 0]
    return jnp.mean(lse - tgt)


if __name__ == "__main__":
    key = jax.random.PRNGKey(0)
    k1, k2, k3 = jax.random.split(key, 3)

    B, P, C, D = 8, 4, 16, 32   # batch, branches (1 global + 3 jigsaw), classes, feat dim
    scores = jax.random.normal(k1, (B, P, C), dtype=jnp.float32)
    features = jax.random.normal(k2, (B, P, D), dtype=jnp.float32)
    targets = jax.random.randint(k3, (B,), 0, C, dtype=jnp.int32)

    loss = jax.block_until_ready(softmax_triplet_loss(scores, features, targets))
    ref = _reference_loss(scores, targets)
    assert jnp.allclose(loss, ref, atol=1e-5, rtol=1e-5), (loss, ref)

    # native-bf16 logits path: HBM traffic stays bf16, f32 upcast is in-kernel
    loss_bf16 = jax.block_until_ready(
        softmax_triplet_loss(scores.astype(jnp.bfloat16), features, targets))
    assert jnp.allclose(loss_bf16, ref, atol=5e-2, rtol=5e-2), (loss_bf16, ref)

    # jigsaw=False path: plain mean cross-entropy over (B, C) scores
    scores2 = scores[:, 0, :]
    loss_nj = jax.block_until_ready(
        softmax_triplet_loss(scores2, features[:, 0, :], targets, jigsaw=False))
    ref_nj = _reference_loss_nojigsaw(scores2, targets)
    assert jnp.allclose(loss_nj, ref_nj, atol=1e-5, rtol=1e-5), (loss_nj, ref_nj)

    print("KERNEL_OK")
</pallas_src>

<mosaic_0001>
module attributes {stable_mosaic.version = 11 : i64} {
  func.func @kernel(%arg0: i32, %arg1: memref<32x16xf32, #tpu.memory_space<vmem>>, %arg2: memref<32x1xi32, #tpu.memory_space<vmem>>, %arg3: memref<1x8x128xf32, #tpu.memory_space<vmem>>) attributes {dimension_semantics = [#tpu.dimension_semantics<parallel>], iteration_bounds = array<i64: 1>, scalar_prefetch = 0 : i64, scratch_operands = 0 : i64, tpu.core_type = #tpu.core_type<tc>, window_params = [{transform_indices = @transform_0, window_bounds = array<i64: 32, 16>}, {transform_indices = @transform_1, window_bounds = array<i64: 32, 1>}, {transform_indices = @transform_2, window_bounds = array<i64: 1, 8, 128>}]} {
    %c0 = arith.constant 0 : index
    %c0_0 = arith.constant 0 : index
    %0 = vector.load %arg1[%c0, %c0_0] : memref<32x16xf32, #tpu.memory_space<vmem>>, vector<32x16xf32>
    %c0_1 = arith.constant 0 : index
    %c0_2 = arith.constant 0 : index
    %1 = vector.load %arg2[%c0_1, %c0_2] : memref<32x1xi32, #tpu.memory_space<vmem>>, vector<32x1xi32>
    %cst = arith.constant dense<0xFF800000> : vector<32xf32>
    %2 = vector.multi_reduction <maximumf>, %0, %cst [1] : vector<32x16xf32> to vector<32xf32>
    %3 = vector.shape_cast %2 : vector<32xf32> to vector<32x1xf32>
    %4 = vector.broadcast %3 : vector<32x1xf32> to vector<32x16xf32>
    %5 = arith.subf %0, %4 : vector<32x16xf32>
    %6 = math.exp %5 : vector<32x16xf32>
    %cst_3 = arith.constant dense<0.000000e+00> : vector<32xf32>
    %7 = vector.multi_reduction <add>, %6, %cst_3 [1] : vector<32x16xf32> to vector<32xf32>
    %8 = vector.shape_cast %7 : vector<32xf32> to vector<32x1xf32>
    %9 = math.log %8 : vector<32x1xf32>
    %10 = tpu.iota {dimensions = array<i32: 1>} : vector<1x16xi32>
    %11 = vector.broadcast %10 : vector<1x16xi32> to vector<32x16xi32>
    %12 = vector.broadcast %1 : vector<32x1xi32> to vector<32x16xi32>
    %13 = arith.cmpi eq, %11, %12 : vector<32x16xi32>
    %cst_4 = arith.constant 0.000000e+00 : f32
    %14 = vector.broadcast %cst_4 : f32 to vector<32x16xf32>
    %15 = arith.select %13, %5, %14 : vector<32x16xi1>, vector<32x16xf32>
    %cst_5 = arith.constant dense<0.000000e+00> : vector<32xf32>
    %16 = vector.multi_reduction <add>, %15, %cst_5 [1] : vector<32x16xf32> to vector<32xf32>
    %17 = vector.shape_cast %16 : vector<32xf32> to vector<32x1xf32>
    %18 = arith.subf %9, %17 : vector<32x1xf32>
    %19 = tpu.iota {dimensions = array<i32: 0>} : vector<32x1xi32>
    %c32_i32 = arith.constant 32 : i32
    %20 = arith.muli %arg0, %c32_i32 : i32
    %21 = vector.broadcast %20 : i32 to vector<32x1xi32>
    %22 = arith.addi %19, %21 : vector<32x1xi32>
    %c4_i32 = arith.constant 4 : i32
    %c0_i32 = arith.constant 0 : i32
    %23 = arith.cmpi eq, %c4_i32, %c0_i32 : i32
    %c1_i32 = arith.constant 1 : i32
    %24 = arith.select %23, %c1_i32, %c4_i32 : i32
    %25 = vector.broadcast %24 : i32 to vector<32x1xi32>
    %26 = arith.remsi %22, %25 : vector<32x1xi32>
    %c0_i32_6 = arith.constant 0 : i32
    %27 = vector.broadcast %c0_i32_6 : i32 to vector<32x1xi32>
    %28 = arith.cmpi ne, %26, %27 : vector<32x1xi32>
    %c0_i32_7 = arith.constant 0 : i32
    %29 = vector.broadcast %c0_i32_7 : i32 to vector<32x1xi32>
    %30 = arith.cmpi slt, %26, %29 : vector<32x1xi32>
    %c0_i32_8 = arith.constant 0 : i32
    %31 = arith.cmpi slt, %24, %c0_i32_8 : i32
    %32 = vector.broadcast %31 : i1 to vector<32x1xi1>
    %33 = vector.broadcast %32 : vector<32x1xi1> to vector<32x1xi1>
    %34 = arith.xori %30, %33 : vector<32x1xi1>
    %35 = arith.andi %34, %28 : vector<32x1xi1>
    %36 = vector.broadcast %24 : i32 to vector<32x1xi32>
    %37 = arith.addi %26, %36 : vector<32x1xi32>
    %38 = arith.select %35, %37, %26 : vector<32x1xi1>, vector<32x1xi32>
    %c0_i32_9 = arith.constant 0 : i32
    %39 = vector.broadcast %c0_i32_9 : i32 to vector<32x1xi32>
    %40 = arith.cmpi eq, %38, %39 : vector<32x1xi32>
    %cst_10 = arith.constant 5.000000e-01 : f32
    %cst_11 = arith.constant 0.166666672 : f32
    %41 = vector.broadcast %cst_10 : f32 to vector<32x1xf32>
    %42 = vector.broadcast %cst_11 : f32 to vector<32x1xf32>
    %43 = arith.select %40, %41, %42 : vector<32x1xi1>, vector<32x1xf32>
    %cst_12 = arith.constant 1.250000e-01 : f32
    %44 = vector.broadcast %cst_12 : f32 to vector<32x1xf32>
    %45 = arith.mulf %43, %44 : vector<32x1xf32>
    %46 = arith.mulf %18, %45 : vector<32x1xf32>
    %47 = vector.shape_cast %46 : vector<32x1xf32> to vector<1x32x1xf32>
    %cst_13 = arith.constant dense<0.000000e+00> : vector<1xf32>
    %48 = vector.multi_reduction <add>, %47, %cst_13 [1, 2] : vector<1x32x1xf32> to vector<1xf32>
    %49 = vector.shape_cast %48 : vector<1xf32> to vector<1x1x1xf32>
    %50 = vector.extract %49[0, 0, 0] : f32 from vector<1x1x1xf32>
    %51 = vector.broadcast %50 : f32 to vector<1x8x128xf32>
    %c0_14 = arith.constant 0 : index
    %c0_15 = arith.constant 0 : index
    %c0_16 = arith.constant 0 : index
    %52 = vector.load %arg3[%c0_14, %c0_15, %c0_16] : memref<1x8x128xf32, #tpu.memory_space<vmem>>, vector<1x8x128xf32>
    tpu.vector_store %arg3[%c0_14, %c0_15, %c0_16], %51 {strides = array<i32>} : memref<1x8x128xf32, #tpu.memory_space<vmem>>, vector<1x8x128xf32>,
    return
  }
  func.func @transform_0(%arg0: i32) -> (i32, i32) {
    %c0_i32 = arith.constant 0 : i32
    %c0_i32_0 = arith.constant 0 : i32
    return %arg0, %c0_i32 : i32, i32
  }
  func.func @transform_1(%arg0: i32) -> (i32, i32) {
    %c0_i32 = arith.constant 0 : i32
    %c0_i32_0 = arith.constant 0 : i32
    return %arg0, %c0_i32 : i32, i32
  }
  func.func @transform_2(%arg0: i32) -> (i32, i32, i32) {
    %c0_i32 = arith.constant 0 : i32
    %c0_i32_0 = arith.constant 0 : i32
    %c0_i32_1 = arith.constant 0 : i32
    return %arg0, %c0_i32, %c0_i32_0 : i32, i32, i32
  }
}

</mosaic_0001>

<llo_original>
// kernel: tpu_custom_call.1
$region0: #{tpu_custom_call.1}
  #allocation0 [shape = 'u32[]', space=smem, size = 0x4, offset = 0x4, fixed_abs, tag = 'smem constant byte address 0x4 - core index']
  #allocation1 [shape = 'u32[144,128]{1,0:T(1,128)}', space=vmem, size = 0x12000, scoped, tag = 'internal scratch']
  %s0 = inlined_call_operand.vmem [shape: f32[32,16], index: 0, kind: input, shape index: {}]
  %s1 = inlined_call_operand.vmem [shape: s32[32,1], index: 1, kind: input, shape index: {}]
  %s2 = inlined_call_operand.hbm [shape: f32[1,8,128], index: 2, kind: output, shape index: {}]
  %s3 = sld [smem:[#allocation0]]
  $region18: #{tpu_custom_call.1} parent=0
    _
  %s5 = ssub.s32 1, %s3
  %s6 = scalar_select 0, %s5, %s3
  $region1: #{tpu_custom_call.1} parent=0
    #allocation2 [shape = 'u8[4096]{0}', space=vmem, size = 0x1000, scoped, tag = 'output window, operand 0, single buffered']
    #allocation3 [shape = 's32[1]{0}', space=sflag, size = 0x4, scoped, tag = 'scoped memory for tpu_custom_call.1']
    %7 = vsyncpa [#allocation3], 0
    // Predicated region
    $region2: #{tpu_custom_call.1} parent=1 // pred_check
      _
    $region3: #{tpu_custom_call.1} parent=1 // pred_check_branch
      %9 = sbr.rel (0) target = $region5
    $region4: #{tpu_custom_call.1} parent=1 // pred_region
      _
    $region5: #{tpu_custom_call.1} parent=1 // pred_fallthru
      _
    // Predicated region
    $region6: #{tpu_custom_call.1} parent=1 // pred_check
      _
    $region7: #{tpu_custom_call.1} parent=1 // pred_check_branch
      %11 = sbr.rel (0) target = $region9
    $region8: #{tpu_custom_call.1} parent=1 // pred_region
      _
    $region9: #{tpu_custom_call.1} parent=1 // pred_fallthru
      _
    %v12 = vld [vmem:[%s0] sm:$0xff]
    %v13 = vld [vmem:[%s0 + $0x8] sm:$0xff]
    %v14 = vld [vmem:[%s0 + $0x10] sm:$0xff]
    %v15 = vld [vmem:[%s0 + $0x18] sm:$0xff]
    %v16 = vld [vmem:[%s1] sm:$0xff]
    %v17 = vld [vmem:[%s1 + $0x8] sm:$0xff]
    %v18 = vld [vmem:[%s1 + $0x10] sm:$0xff]
    %v19 = vld [vmem:[%s1 + $0x18] sm:$0xff]
    %vm20 = vcmask 130048
    %v21 = vsel %vm20, %v12, -inf
    %22 = vmax.xlane.f32.xlu0 %v21
    %v23 = vpop.xlane.xlu0 %22
    %v24 = vsel %vm20, %v13, -inf
    %25 = vmax.xlane.f32.xlu0 %v24
    %v26 = vpop.xlane.xlu0 %25
    %v27 = vsel %vm20, %v14, -inf
    %28 = vmax.xlane.f32.xlu0 %v27
    %v29 = vpop.xlane.xlu0 %28
    %v30 = vsel %vm20, %v15, -inf
    %31 = vmax.xlane.f32.xlu0 %v30
    %v32 = vpop.xlane.xlu0 %31
    %v33 = vsub.f32 %v12, %v23
    %v34 = vsub.f32 %v13, %v26
    %v35 = vsub.f32 %v14, %v29
    %v36 = vsub.f32 %v15, %v32
    %v37 = vmul.f32 %v33, 1.442695
    %v38 = vpow.pop %v37
    %v39 = vmul.f32 %v34, 1.442695
    %v40 = vpow.pop %v39
    %v41 = vmul.f32 %v35, 1.442695
    %v42 = vpow.pop %v41
    %v43 = vmul.f32 %v36, 1.442695
    %v44 = vpow.pop %v43
    %v45 = vsel %vm20, %v38, 0.0
    %46 = vadd.xlane.f32.xlu0 %v45
    %v47 = vpop.xlane.xlu0 %46
    %v48 = vsel %vm20, %v40, 0.0
    %49 = vadd.xlane.f32.xlu0 %v48
    %v50 = vpop.xlane.xlu0 %49
    %v51 = vsel %vm20, %v42, 0.0
    %52 = vadd.xlane.f32.xlu0 %v51
    %v53 = vpop.xlane.xlu0 %52
    %v54 = vsel %vm20, %v44, 0.0
    %55 = vadd.xlane.f32.xlu0 %v54
    %v56 = vpop.xlane.xlu0 %55
    %v57 = vlog2.pop %v47
    %v58 = vmul.f32 %v57, 0.6931472
    %v59 = vlog2.pop %v50
    %v60 = vmul.f32 %v59, 0.6931472
    %v61 = vlog2.pop %v53
    %v62 = vmul.f32 %v61, 0.6931472
    %v63 = vlog2.pop %v56
    %v64 = vmul.f32 %v63, 0.6931472
    %v65 = vlaneseq
    %v66 = vand.u32 %v65, 127
    %67 = vset.pattern.permute.xlu0 0
    %68 = vperm.xlu0 %67, %v16
    %v69 = vpop.permute.xlu0 %68
    %70 = vset.pattern.permute.xlu0 0
    %71 = vperm.xlu0 %70, %v17
    %v72 = vpop.permute.xlu0 %71
    %73 = vset.pattern.permute.xlu0 0
    %74 = vperm.xlu0 %73, %v18
    %v75 = vpop.permute.xlu0 %74
    %76 = vset.pattern.permute.xlu0 0
    %77 = vperm.xlu0 %76, %v19
    %v78 = vpop.permute.xlu0 %77
    %vm79 = vcmp.eq.s32.totalorder %v66, %v69
    %vm80 = vcmp.eq.s32.totalorder %v66, %v72
    %vm81 = vcmp.eq.s32.totalorder %v66, %v75
    %vm82 = vcmp.eq.s32.totalorder %v66, %v78
    %v83 = vsel %vm79, %v33, 0.0
    %v84 = vsel %vm80, %v34, 0.0
    %v85 = vsel %vm81, %v35, 0.0
    %v86 = vsel %vm82, %v36, 0.0
    %v87 = vsel %vm20, %v83, 0.0
    %88 = vadd.xlane.f32.xlu0 %v87
    %v89 = vpop.xlane.xlu0 %88
    %v90 = vsel %vm20, %v84, 0.0
    %91 = vadd.xlane.f32.xlu0 %v90
    %v92 = vpop.xlane.xlu0 %91
    %v93 = vsel %vm20, %v85, 0.0
    %94 = vadd.xlane.f32.xlu0 %v93
    %v95 = vpop.xlane.xlu0 %94
    %v96 = vsel %vm20, %v86, 0.0
    %97 = vadd.xlane.f32.xlu0 %v96
    %v98 = vpop.xlane.xlu0 %97
    %v99 = vsub.f32 %v58, %v89
    %v100 = vsub.f32 %v60, %v92
    %v101 = vsub.f32 %v62, %v95
    %v102 = vsub.f32 %v64, %v98
    %v103 = vlaneseq
    %v104 = vshrl.u32 %v103, 7
    %v105 = vadd.s32 %v104, 8
    %v106 = vadd.s32 %v104, 16
    %v107 = vadd.s32 %v104, 24
    %s108 = smul.u32 0, 32
    %v109 = vstv %s108
    %v110 = vadd.s32 %v104, %v109
    %v111 = vadd.s32 %v105, %v109
    %v112 = vadd.s32 %v106, %v109
    %v113 = vadd.s32 %v107, %v109
    %vm114 = vcmp.lt.s32.totalorder %v110, 0
    %v115 = vsub.s32 0, %v110
    %v116 = vsel %vm114, %v115, %v110
    %v117 = vshrl.u32 %v116, 2
    %v118 = vand.u32 %v116, 3
    %v119 = vsub.s32 0, %v118
    %v120 = vsel %vm114, %v119, %v118
    %vm121 = vcmp.lt.s32.totalorder %v111, 0
    %v122 = vsub.s32 0, %v111
    %v123 = vsel %vm121, %v122, %v111
    %v124 = vshrl.u32 %v123, 2
    %v125 = vand.u32 %v123, 3
    %v126 = vsub.s32 0, %v125
    %v127 = vsel %vm121, %v126, %v125
    %vm128 = vcmp.lt.s32.totalorder %v112, 0
    %v129 = vsub.s32 0, %v112
    %v130 = vsel %vm128, %v129, %v112
    %v131 = vshrl.u32 %v130, 2
    %v132 = vand.u32 %v130, 3
    %v133 = vsub.s32 0, %v132
    %v134 = vsel %vm128, %v133, %v132
    %vm135 = vcmp.lt.s32.totalorder %v113, 0
    %v136 = vsub.s32 0, %v113
    %v137 = vsel %vm135, %v136, %v113
    %v138 = vshrl.u32 %v137, 2
    %v139 = vand.u32 %v137, 3
    %v140 = vsub.s32 0, %v139
    %v141 = vsel %vm135, %v140, %v139
    %vm142 = vcmp.ne.s32.totalorder %v120, 0
    %vm143 = vcmp.ne.s32.totalorder %v127, 0
    %vm144 = vcmp.ne.s32.totalorder %v134, 0
    %vm145 = vcmp.ne.s32.totalorder %v141, 0
    %vm146 = vcmp.lt.s32.totalorder %v120, 0
    %vm147 = vcmp.lt.s32.totalorder %v127, 0
    %vm148 = vcmp.lt.s32.totalorder %v134, 0
    %vm149 = vcmp.lt.s32.totalorder %v141, 0
    %vm150 = vmand %vm146, %vm142
    %vm151 = vmand %vm147, %vm143
    %vm152 = vmand %vm148, %vm144
    %vm153 = vmand %vm149, %vm145
    %v154 = vadd.s32 %v120, 4
    %v155 = vadd.s32 %v127, 4
    %v156 = vadd.s32 %v134, 4
    %v157 = vadd.s32 %v141, 4
    %v158 = vsel %vm150, %v154, %v120
    %v159 = vsel %vm151, %v155, %v127
    %v160 = vsel %vm152, %v156, %v134
    %v161 = vsel %vm153, %v157, %v141
    %vm162 = vcmp.eq.s32.totalorder %v158, 0
    %vm163 = vcmp.eq.s32.totalorder %v159, 0
    %vm164 = vcmp.eq.s32.totalorder %v160, 0
    %vm165 = vcmp.eq.s32.totalorder %v161, 0
    %v166 = vsel %vm162, 0.5, 0.16666667
    %v167 = vsel %vm163, 0.5, 0.16666667
    %v168 = vsel %vm164, 0.5, 0.16666667
    %v169 = vsel %vm165, 0.5, 0.16666667
    %v170 = vmul.f32 %v166, 0.125
    %v171 = vmul.f32 %v167, 0.125
    %v172 = vmul.f32 %v168, 0.125
    %v173 = vmul.f32 %v169, 0.125
    %v174 = vmul.f32 %v99, %v170
    %v175 = vmul.f32 %v100, %v171
    %v176 = vmul.f32 %v101, %v172
    %v177 = vmul.f32 %v102, %v173
    %vm178 = vcmask 7168
    %v179 = vsel %vm178, %v174, 0.0
    %v180 = vsel %vm178, %v175, 0.0
    %v181 = vadd.f32 %v179, %v180
    %v182 = vsel %vm178, %v176, 0.0
    %v183 = vadd.f32 %v181, %v182
    %v184 = vsel %vm178, %v177, 0.0
    %v185 = vadd.f32 %v183, %v184
    %186 = vadd.xlane.f32.xlu0 %v185
    %v187 = vpop.xlane.xlu0 %186
    %v188 = vrot.slane %v187, 4
    %v189 = vadd.f32 %v187, %v188
    %v190 = vrot.slane %v189, 2
    %v191 = vadd.f32 %v189, %v190
    %v192 = vrot.slane %v191, 1
    %v193 = vadd.f32 %v191, %v192
    %s194 = vtos %v193
    %v195 = vstv %s194
    %196 = vst [vmem:[#allocation2] sm:$0xff] %v195
    // Predicated region
    $region10: #{tpu_custom_call.1} parent=1 // pred_check
      _
    $region11: #{tpu_custom_call.1} parent=1 // pred_check_branch
      %198 = sbr.rel (0) target = $region13
    $region12: #{tpu_custom_call.1} parent=1 // pred_region
      %s200 = ssub.s32 128, 128
      %201 = vsyncadd [#allocation3], %s200
      %s203 = sshll.u32 [#allocation2], 4
      %s204 = int_to_ptr.vmem [resolvable:$true] %s203
      %206 = dma.vmem_to_hbm [thread:$0]  %s204, 128, %s2, [#allocation3]
    $region13: #{tpu_custom_call.1} parent=1 // pred_fallthru
      _
    // Predicated region
    $region14: #{tpu_custom_call.1} parent=1 // pred_check
      _
    $region15: #{tpu_custom_call.1} parent=1 // pred_check_branch
      %208 = sbr.rel (0) target = $region17
    $region16: #{tpu_custom_call.1} parent=1 // pred_region
      %209 = dma.done [#allocation3], 128
    $region17: #{tpu_custom_call.1} parent=1 // pred_fallthru
      _
    %210 = vsyncpa [#allocation3], 1

</llo_original>
